<compile_context>
chip_gen: v7x
topology: tpu7x:2x2x1
jax: 0.10.0
libtpu: 0.0.40
codegen_flags: <defaults>
</compile_context>

<pallas_src>
import functools

import jax
import jax.numpy as jnp
from jax.experimental import pallas as pl
from jax.experimental.pallas import tpu as pltpu

# ----------------------------- config (small) -----------------------------
SEQ_LEN = 16
LABEL_LEN = 8
PRED_LEN = 8
ENC_IN = 4
DEC_IN = 4
C_OUT = 4
D_MODEL = 32
MARK_DIM = 4       # timeF features (e.g. freq='h')
MOVING_AVG = 5     # series_decomp kernel size (odd)

LDEC = LABEL_LEN + PRED_LEN
# The cyclic-shift construction of seasonal_init inside the kernel relies on
# the decoder length matching the encoder length (true for this config).
assert SEQ_LEN == LDEC
# `trend_init + trend_part + seasonal_part` requires enc_in == c_out.
assert ENC_IN == C_OUT and DEC_IN == ENC_IN


def _roll_rows(v, shift):
    """Cyclic shift along the time (sublane) axis; XLU op, no VMEM copies."""
    return pltpu.roll(v, shift=shift % v.shape[0], axis=0)


# ------------------------- single fused forward kernel ---------------------
def _fused_forward_kernel(x_ref, mark_enc_ref, mark_dec_ref,
                          enc_w_ref, dec_w_ref, w_comb_ref, w_cross_ref,
                          out_ref, *, k, label_len, pred_len):
    f32 = jnp.float32
    x = x_ref[0]                       # (L, C)
    mark_e = mark_enc_ref[0]           # (L, Cm)
    mark_d = mark_dec_ref[0]           # (Ldec == L, Cm)
    L, C = x.shape
    p = (k - 1) // 2

    # --- series_decomp: replicate-padded moving average (trend) + residual ---
    row = jax.lax.broadcasted_iota(jnp.int32, (L, C), 0)
    x_first = jnp.broadcast_to(x[0:1, :], (L, C))
    x_last = jnp.broadcast_to(x[L - 1:L, :], (L, C))
    acc = x
    for d in range(1, p + 1):                       # small static unroll
        past = _roll_rows(x, d)                     # x[t - d] (cyclic)
        acc = acc + jnp.where(row < d, x_first, past)
        futr = _roll_rows(x, -d)                    # x[t + d] (cyclic)
        acc = acc + jnp.where(row >= L - d, x_last, futr)
    moving_mean = acc * (1.0 / k)                   # trend component
    seasonal = x - moving_mean                      # seasonal residual

    # torch.mean(x_enc, dim=1): the last pred_len rows of trend_init are this
    # mean repeated, and they are the only trend_init rows reaching the output.
    mean_x = jnp.mean(x, axis=0, keepdims=True)     # (1, C)

    # seasonal_init = [seasonal[-label_len:], zeros(pred_len)]  (Ldec == L)
    seasonal_init = jnp.where(row < label_len,
                              _roll_rows(seasonal, label_len - L),
                              jnp.zeros_like(seasonal))

    # --- DataEmbedding_wo_pos: circular Conv1d(k=3) token emb + timeF linear ---
    # One MXU dot per embedding on lane-concatenated [x(t-1)|x(t)|x(t+1)|mark];
    # the matching (3*Cin+Cm, D) weight was packed once in the wrapper.
    enc_cat = jnp.concatenate(
        [_roll_rows(x, 1), x, _roll_rows(x, -1), mark_e], axis=1)
    enc_emb = jnp.dot(enc_cat, enc_w_ref[...], preferred_element_type=f32)

    dec_cat = jnp.concatenate(
        [_roll_rows(seasonal_init, 1), seasonal_init,
         _roll_rows(seasonal_init, -1), mark_d], axis=1)
    dec_emb = jnp.dot(dec_cat, dec_w_ref[...], preferred_element_type=f32)

    # --- client/server head + final combination (last pred_len rows only) ---
    # TODO(synk): SplitOneEncoder/.../SplitTwoDecoder (FEDformer Fourier-block
    # stacks) are undefined in the module source; linear stand-ins used here.
    e_pool = jnp.mean(enc_emb, axis=0, keepdims=True)                      # (1, D)
    cross = jnp.dot(e_pool, w_cross_ref[...], preferred_element_type=f32)  # (1, Co)
    d_tail = dec_emb[label_len:, :]                                        # (pred_len, D)
    proj = jnp.dot(d_tail, w_comb_ref[...], preferred_element_type=f32)    # seas+trend fused

    out = (jnp.broadcast_to(mean_x, proj.shape)      # trend_init tail (mean rows)
           + proj
           + jnp.broadcast_to(cross, proj.shape))
    out_ref[0] = out.astype(out_ref.dtype)


# ------------------------------ wrapper ------------------------------------
def splitfed_forward(packed, x_enc, x_mark_enc, x_mark_dec):
    B, L, Cin = x_enc.shape
    Cm = x_mark_enc.shape[2]
    Ldec = x_mark_dec.shape[1]
    enc_w, dec_w = packed["enc_w"], packed["dec_w"]
    w_comb, w_cross = packed["w_comb"], packed["w_cross"]
    Co = w_comb.shape[1]

    kernel = functools.partial(_fused_forward_kernel, k=MOVING_AVG,
                               label_len=LABEL_LEN, pred_len=PRED_LEN)
    return pl.pallas_call(
        kernel,
        out_shape=jax.ShapeDtypeStruct((B, PRED_LEN, Co), jnp.float32),
        grid=(B,),
        in_specs=[
            pl.BlockSpec((1, L, Cin), lambda b: (b, 0, 0)),       # x_enc
            pl.BlockSpec((1, L, Cm), lambda b: (b, 0, 0)),        # x_mark_enc
            pl.BlockSpec((1, Ldec, Cm), lambda b: (b, 0, 0)),     # x_mark_dec
            pl.BlockSpec(enc_w.shape, lambda b: (0, 0)),          # packed enc emb weights
            pl.BlockSpec(dec_w.shape, lambda b: (0, 0)),          # packed dec emb weights
            pl.BlockSpec(w_comb.shape, lambda b: (0, 0)),         # w_seas + w_trend
            pl.BlockSpec(w_cross.shape, lambda b: (0, 0)),        # cross projection
        ],
        out_specs=pl.BlockSpec((1, PRED_LEN, Co), lambda b: (b, 0, 0)),
        compiler_params=pltpu.CompilerParams(
            dimension_semantics=("parallel",)),  # batch shards across TCs on v7x
    )(x_enc, x_mark_enc, x_mark_dec, enc_w, dec_w, w_comb, w_cross)


# ------------------------------ parameters ---------------------------------
def init_params():
    keys = jax.random.split(jax.random.PRNGKey(42), 7)
    scale = 0.02
    return {
        "enc_tok": scale * jax.random.normal(keys[0], (3, ENC_IN, D_MODEL), jnp.float32),
        "enc_temp": scale * jax.random.normal(keys[1], (MARK_DIM, D_MODEL), jnp.float32),
        "dec_tok": scale * jax.random.normal(keys[2], (3, DEC_IN, D_MODEL), jnp.float32),
        "dec_temp": scale * jax.random.normal(keys[3], (MARK_DIM, D_MODEL), jnp.float32),
        "w_seas": scale * jax.random.normal(keys[4], (D_MODEL, C_OUT), jnp.float32),
        "w_trend": scale * jax.random.normal(keys[5], (D_MODEL, C_OUT), jnp.float32),
        "w_cross": scale * jax.random.normal(keys[6], (D_MODEL, C_OUT), jnp.float32),
    }


def pack_params(params):
    """One-time weight layout prep (outside jit and outside the kernel)."""
    enc_w = jnp.concatenate([params["enc_tok"][0], params["enc_tok"][1],
                             params["enc_tok"][2], params["enc_temp"]], axis=0)
    dec_w = jnp.concatenate([params["dec_tok"][0], params["dec_tok"][1],
                             params["dec_tok"][2], params["dec_temp"]], axis=0)
    return {
        "enc_w": enc_w,                                   # (3*ENC_IN + MARK_DIM, D)
        "dec_w": dec_w,                                   # (3*DEC_IN + MARK_DIM, D)
        "w_comb": params["w_seas"] + params["w_trend"],   # seasonal+trend proj fused
        "w_cross": params["w_cross"],
    }


@jax.jit
def model_forward(packed, x_enc, x_mark_enc, x_dec, x_mark_dec):
    # x_dec is only used for its shape in the reference forward (the `zeros`
    # tensor it sizes is never consumed), so it is accepted but unused here.
    del x_dec
    return splitfed_forward(packed, x_enc, x_mark_enc, x_mark_dec)


if __name__ == "__main__":
    key = jax.random.PRNGKey(0)
    k1, k2, k3, k4 = jax.random.split(key, 4)
    B = 2
    x_enc = jax.random.normal(k1, (B, SEQ_LEN, ENC_IN), jnp.float32)
    x_mark_enc = jax.random.normal(k2, (B, SEQ_LEN, MARK_DIM), jnp.float32)
    x_dec = jax.random.normal(k3, (B, LDEC, DEC_IN), jnp.float32)
    x_mark_dec = jax.random.normal(k4, (B, LDEC, MARK_DIM), jnp.float32)

    params = init_params()
    packed = pack_params(params)
    out = model_forward(packed, x_enc, x_mark_enc, x_dec, x_mark_dec)
    out = jax.block_until_ready(out)
    assert out.shape == (B, PRED_LEN, C_OUT), out.shape
    print("KERNEL_OK")
</pallas_src>

<mosaic_0001>
module attributes {stable_mosaic.version = 11 : i64} {
  func.func @_fused_forward_kernel(%arg0: i32, %arg1: memref<1x16x4xf32, #tpu.memory_space<vmem>>, %arg2: memref<1x16x4xf32, #tpu.memory_space<vmem>>, %arg3: memref<1x16x4xf32, #tpu.memory_space<vmem>>, %arg4: memref<16x32xf32, #tpu.memory_space<vmem>>, %arg5: memref<16x32xf32, #tpu.memory_space<vmem>>, %arg6: memref<32x4xf32, #tpu.memory_space<vmem>>, %arg7: memref<32x4xf32, #tpu.memory_space<vmem>>, %arg8: memref<1x8x4xf32, #tpu.memory_space<vmem>>) attributes {dimension_semantics = [#tpu.dimension_semantics<parallel>], iteration_bounds = array<i64: 2>, scalar_prefetch = 0 : i64, scratch_operands = 0 : i64, tpu.core_type = #tpu.core_type<tc>, window_params = [{transform_indices = @transform_0, window_bounds = array<i64: 1, 16, 4>}, {transform_indices = @transform_1, window_bounds = array<i64: 1, 16, 4>}, {transform_indices = @transform_2, window_bounds = array<i64: 1, 16, 4>}, {pipeline_mode = #tpu.pipeline_mode<synchronous>, transform_indices = @transform_3, window_bounds = array<i64: 16, 32>}, {pipeline_mode = #tpu.pipeline_mode<synchronous>, transform_indices = @transform_4, window_bounds = array<i64: 16, 32>}, {pipeline_mode = #tpu.pipeline_mode<synchronous>, transform_indices = @transform_5, window_bounds = array<i64: 32, 4>}, {pipeline_mode = #tpu.pipeline_mode<synchronous>, transform_indices = @transform_6, window_bounds = array<i64: 32, 4>}, {transform_indices = @transform_7, window_bounds = array<i64: 1, 8, 4>}]} {
    %c0 = arith.constant 0 : index
    %c0_0 = arith.constant 0 : index
    %c0_1 = arith.constant 0 : index
    %0 = vector.load %arg1[%c0, %c0_0, %c0_1] : memref<1x16x4xf32, #tpu.memory_space<vmem>>, vector<1x16x4xf32>
    %1 = vector.shape_cast %0 : vector<1x16x4xf32> to vector<16x4xf32>
    %c0_2 = arith.constant 0 : index
    %c0_3 = arith.constant 0 : index
    %c0_4 = arith.constant 0 : index
    %2 = vector.load %arg2[%c0_2, %c0_3, %c0_4] : memref<1x16x4xf32, #tpu.memory_space<vmem>>, vector<1x16x4xf32>
    %3 = vector.shape_cast %2 : vector<1x16x4xf32> to vector<16x4xf32>
    %c0_5 = arith.constant 0 : index
    %c0_6 = arith.constant 0 : index
    %c0_7 = arith.constant 0 : index
    %4 = vector.load %arg3[%c0_5, %c0_6, %c0_7] : memref<1x16x4xf32, #tpu.memory_space<vmem>>, vector<1x16x4xf32>
    %5 = vector.shape_cast %4 : vector<1x16x4xf32> to vector<16x4xf32>
    %6 = tpu.iota {dimensions = array<i32: 0>} : vector<16x4xi32>
    %7 = vector.extract_strided_slice %1 {offsets = [0, 0], sizes = [1, 4], strides = [1, 1]} : vector<16x4xf32> to vector<1x4xf32>
    %8 = vector.shape_cast %7 : vector<1x4xf32> to vector<1x4xf32>
    %9 = vector.broadcast %8 : vector<1x4xf32> to vector<16x4xf32>
    %10 = vector.extract_strided_slice %1 {offsets = [15, 0], sizes = [1, 4], strides = [1, 1]} : vector<16x4xf32> to vector<1x4xf32>
    %11 = vector.shape_cast %10 : vector<1x4xf32> to vector<1x4xf32>
    %12 = vector.broadcast %11 : vector<1x4xf32> to vector<16x4xf32>
    %c1_i32 = arith.constant 1 : i32
    %13 = tpu.dynamic_rotate %1 by %c1_i32 dim 0 : vector<16x4xf32>, i32 -> vector<16x4xf32>
    %c1_i32_8 = arith.constant 1 : i32
    %14 = vector.broadcast %c1_i32_8 : i32 to vector<16x4xi32>
    %15 = arith.cmpi slt, %6, %14 : vector<16x4xi32>
    %16 = arith.select %15, %9, %13 : vector<16x4xi1>, vector<16x4xf32>
    %17 = arith.addf %1, %16 : vector<16x4xf32>
    %c15_i32 = arith.constant 15 : i32
    %18 = tpu.dynamic_rotate %1 by %c15_i32 dim 0 : vector<16x4xf32>, i32 -> vector<16x4xf32>
    %c15_i32_9 = arith.constant 15 : i32
    %19 = vector.broadcast %c15_i32_9 : i32 to vector<16x4xi32>
    %20 = arith.cmpi sge, %6, %19 : vector<16x4xi32>
    %21 = arith.select %20, %12, %18 : vector<16x4xi1>, vector<16x4xf32>
    %22 = arith.addf %17, %21 : vector<16x4xf32>
    %c2_i32 = arith.constant 2 : i32
    %23 = tpu.dynamic_rotate %1 by %c2_i32 dim 0 : vector<16x4xf32>, i32 -> vector<16x4xf32>
    %c2_i32_10 = arith.constant 2 : i32
    %24 = vector.broadcast %c2_i32_10 : i32 to vector<16x4xi32>
    %25 = arith.cmpi slt, %6, %24 : vector<16x4xi32>
    %26 = arith.select %25, %9, %23 : vector<16x4xi1>, vector<16x4xf32>
    %27 = arith.addf %22, %26 : vector<16x4xf32>
    %c14_i32 = arith.constant 14 : i32
    %28 = tpu.dynamic_rotate %1 by %c14_i32 dim 0 : vector<16x4xf32>, i32 -> vector<16x4xf32>
    %c14_i32_11 = arith.constant 14 : i32
    %29 = vector.broadcast %c14_i32_11 : i32 to vector<16x4xi32>
    %30 = arith.cmpi sge, %6, %29 : vector<16x4xi32>
    %31 = arith.select %30, %12, %28 : vector<16x4xi1>, vector<16x4xf32>
    %32 = arith.addf %27, %31 : vector<16x4xf32>
    %cst = arith.constant 2.000000e-01 : f32
    %33 = vector.broadcast %cst : f32 to vector<16x4xf32>
    %34 = arith.mulf %32, %33 : vector<16x4xf32>
    %35 = arith.subf %1, %34 : vector<16x4xf32>
    %cst_12 = arith.constant dense<0.000000e+00> : vector<4xf32>
    %36 = vector.multi_reduction <add>, %1, %cst_12 [0] : vector<16x4xf32> to vector<4xf32>
    %37 = vector.shape_cast %36 : vector<4xf32> to vector<1x4xf32>
    %cst_13 = arith.constant 1.600000e+01 : f32
    %38 = vector.broadcast %cst_13 : f32 to vector<1x4xf32>
    %39 = arith.divf %37, %38 : vector<1x4xf32>
    %c8_i32 = arith.constant 8 : i32
    %40 = vector.broadcast %c8_i32 : i32 to vector<16x4xi32>
    %41 = arith.cmpi slt, %6, %40 : vector<16x4xi32>
    %c8_i32_14 = arith.constant 8 : i32
    %42 = tpu.dynamic_rotate %35 by %c8_i32_14 dim 0 : vector<16x4xf32>, i32 -> vector<16x4xf32>
    %cst_15 = arith.constant 0.000000e+00 : f32
    %43 = vector.broadcast %cst_15 : f32 to vector<16x4xf32>
    %44 = arith.select %41, %42, %43 : vector<16x4xi1>, vector<16x4xf32>
    %c1_i32_16 = arith.constant 1 : i32
    %45 = tpu.dynamic_rotate %1 by %c1_i32_16 dim 0 : vector<16x4xf32>, i32 -> vector<16x4xf32>
    %c15_i32_17 = arith.constant 15 : i32
    %46 = tpu.dynamic_rotate %1 by %c15_i32_17 dim 0 : vector<16x4xf32>, i32 -> vector<16x4xf32>
    %47 = tpu.concatenate %45, %1, %46, %3 in 1 : vector<16x4xf32>, vector<16x4xf32>, vector<16x4xf32>, vector<16x4xf32> -> vector<16x16xf32>
    %c0_18 = arith.constant 0 : index
    %c0_19 = arith.constant 0 : index
    %48 = vector.load %arg4[%c0_18, %c0_19] : memref<16x32xf32, #tpu.memory_space<vmem>>, vector<16x32xf32>
    %cst_20 = arith.constant dense<0.000000e+00> : vector<16x32xf32>
    %49 = tpu.matmul %47, %48, %cst_20 {dimension_numbers = #tpu.dot_dimension_numbers<[1], [0], [0], [1], [0, 0, 1, 1], [], []>} : vector<16x16xf32>, vector<16x32xf32>, vector<16x32xf32> -> vector<16x32xf32>
    %c1_i32_21 = arith.constant 1 : i32
    %50 = tpu.dynamic_rotate %44 by %c1_i32_21 dim 0 : vector<16x4xf32>, i32 -> vector<16x4xf32>
    %c15_i32_22 = arith.constant 15 : i32
    %51 = tpu.dynamic_rotate %44 by %c15_i32_22 dim 0 : vector<16x4xf32>, i32 -> vector<16x4xf32>
    %52 = tpu.concatenate %50, %44, %51, %5 in 1 : vector<16x4xf32>, vector<16x4xf32>, vector<16x4xf32>, vector<16x4xf32> -> vector<16x16xf32>
    %c0_23 = arith.constant 0 : index
    %c0_24 = arith.constant 0 : index
    %53 = vector.load %arg5[%c0_23, %c0_24] : memref<16x32xf32, #tpu.memory_space<vmem>>, vector<16x32xf32>
    %cst_25 = arith.constant dense<0.000000e+00> : vector<16x32xf32>
    %54 = tpu.matmul %52, %53, %cst_25 {dimension_numbers = #tpu.dot_dimension_numbers<[1], [0], [0], [1], [0, 0, 1, 1], [], []>} : vector<16x16xf32>, vector<16x32xf32>, vector<16x32xf32> -> vector<16x32xf32>
    %cst_26 = arith.constant dense<0.000000e+00> : vector<32xf32>
    %55 = vector.multi_reduction <add>, %49, %cst_26 [0] : vector<16x32xf32> to vector<32xf32>
    %56 = vector.shape_cast %55 : vector<32xf32> to vector<1x32xf32>
    %cst_27 = arith.constant 1.600000e+01 : f32
    %57 = vector.broadcast %cst_27 : f32 to vector<1x32xf32>
    %58 = arith.divf %56, %57 : vector<1x32xf32>
    %c0_28 = arith.constant 0 : index
    %c0_29 = arith.constant 0 : index
    %59 = vector.load %arg7[%c0_28, %c0_29] : memref<32x4xf32, #tpu.memory_space<vmem>>, vector<32x4xf32>
    %cst_30 = arith.constant dense<0.000000e+00> : vector<1x4xf32>
    %60 = tpu.matmul %58, %59, %cst_30 {dimension_numbers = #tpu.dot_dimension_numbers<[1], [0], [0], [1], [0, 0, 1, 1], [], []>} : vector<1x32xf32>, vector<32x4xf32>, vector<1x4xf32> -> vector<1x4xf32>
    %61 = vector.extract_strided_slice %54 {offsets = [8, 0], sizes = [8, 32], strides = [1, 1]} : vector<16x32xf32> to vector<8x32xf32>
    %c0_31 = arith.constant 0 : index
    %c0_32 = arith.constant 0 : index
    %62 = vector.load %arg6[%c0_31, %c0_32] : memref<32x4xf32, #tpu.memory_space<vmem>>, vector<32x4xf32>
    %cst_33 = arith.constant dense<0.000000e+00> : vector<8x4xf32>
    %63 = tpu.matmul %61, %62, %cst_33 {dimension_numbers = #tpu.dot_dimension_numbers<[1], [0], [0], [1], [0, 0, 1, 1], [], []>} : vector<8x32xf32>, vector<32x4xf32>, vector<8x4xf32> -> vector<8x4xf32>
    %64 = vector.shape_cast %39 : vector<1x4xf32> to vector<1x4xf32>
    %65 = vector.broadcast %64 : vector<1x4xf32> to vector<8x4xf32>
    %66 = arith.addf %65, %63 : vector<8x4xf32>
    %67 = vector.shape_cast %60 : vector<1x4xf32> to vector<1x4xf32>
    %68 = vector.broadcast %67 : vector<1x4xf32> to vector<8x4xf32>
    %69 = arith.addf %66, %68 : vector<8x4xf32>
    %c0_34 = arith.constant 0 : index
    %c0_35 = arith.constant 0 : index
    %c0_36 = arith.constant 0 : index
    %70 = vector.load %arg8[%c0_34, %c0_35, %c0_36] : memref<1x8x4xf32, #tpu.memory_space<vmem>>, vector<1x8x4xf32>
    %71 = vector.shape_cast %70 : vector<1x8x4xf32> to vector<8x4xf32>
    %72 = vector.shape_cast %69 : vector<8x4xf32> to vector<1x8x4xf32>
    tpu.vector_store %arg8[%c0_34, %c0_35, %c0_36], %72 {strides = array<i32>} : memref<1x8x4xf32, #tpu.memory_space<vmem>>, vector<1x8x4xf32>,
    return
  }
  func.func @transform_0(%arg0: i32) -> (i32, i32, i32) {
    %c0_i32 = arith.constant 0 : i32
    %c0_i32_0 = arith.constant 0 : i32
    %c0_i32_1 = arith.constant 0 : i32
    return %arg0, %c0_i32, %c0_i32_0 : i32, i32, i32
  }
  func.func @transform_1(%arg0: i32) -> (i32, i32, i32) {
    %c0_i32 = arith.constant 0 : i32
    %c0_i32_0 = arith.constant 0 : i32
    %c0_i32_1 = arith.constant 0 : i32
    return %arg0, %c0_i32, %c0_i32_0 : i32, i32, i32
  }
  func.func @transform_2(%arg0: i32) -> (i32, i32, i32) {
    %c0_i32 = arith.constant 0 : i32
    %c0_i32_0 = arith.constant 0 : i32
    %c0_i32_1 = arith.constant 0 : i32
    return %arg0, %c0_i32, %c0_i32_0 : i32, i32, i32
  }
  func.func @transform_3(%arg0: i32) -> (i32, i32) {
    %c0_i32 = arith.constant 0 : i32
    %c0_i32_0 = arith.constant 0 : i32
    %c0_i32_1 = arith.constant 0 : i32
    return %c0_i32, %c0_i32_0 : i32, i32
  }
  func.func @transform_4(%arg0: i32) -> (i32, i32) {
    %c0_i32 = arith.constant 0 : i32
    %c0_i32_0 = arith.constant 0 : i32
    %c0_i32_1 = arith.constant 0 : i32
    return %c0_i32, %c0_i32_0 : i32, i32
  }
  func.func @transform_5(%arg0: i32) -> (i32, i32) {
    %c0_i32 = arith.constant 0 : i32
    %c0_i32_0 = arith.constant 0 : i32
    %c0_i32_1 = arith.constant 0 : i32
    return %c0_i32, %c0_i32_0 : i32, i32
  }
  func.func @transform_6(%arg0: i32) -> (i32, i32) {
    %c0_i32 = arith.constant 0 : i32
    %c0_i32_0 = arith.constant 0 : i32
    %c0_i32_1 = arith.constant 0 : i32
    return %c0_i32, %c0_i32_0 : i32, i32
  }
  func.func @transform_7(%arg0: i32) -> (i32, i32, i32) {
    %c0_i32 = arith.constant 0 : i32
    %c0_i32_0 = arith.constant 0 : i32
    %c0_i32_1 = arith.constant 0 : i32
    return %arg0, %c0_i32, %c0_i32_0 : i32, i32, i32
  }
}

</mosaic_0001>

<llo_original>
// kernel: model_forward.1
$region0: #{model_forward.1}
  #allocation0 [shape = 'u32[]', space=smem, size = 0x4, offset = 0x4, fixed_abs, tag = 'smem constant byte address 0x4 - core index']
  #allocation1 [shape = 'u32[144,128]{1,0:T(1,128)}', space=vmem, size = 0x12000, scoped, tag = 'internal scratch']
  %s0 = inlined_call_operand.vmem [shape: f32[2,16,4], index: 0, kind: input, shape index: {}]
  %s1 = inlined_call_operand.vmem [shape: f32[2,16,4], index: 1, kind: input, shape index: {}]
  %s2 = inlined_call_operand.vmem [shape: f32[2,16,4], index: 2, kind: input, shape index: {}]
  %s3 = inlined_call_operand.vmem [shape: f32[16,32], index: 3, kind: input, shape index: {}]
  %s4 = inlined_call_operand.vmem [shape: f32[16,32], index: 4, kind: input, shape index: {}]
  %s5 = inlined_call_operand.vmem [shape: f32[32,4], index: 5, kind: input, shape index: {}]
  %s6 = inlined_call_operand.vmem [shape: f32[32,4], index: 6, kind: input, shape index: {}]
  %s7 = inlined_call_operand.vmem [shape: f32[2,8,4], index: 7, kind: output, shape index: {}]
  %s8 = sld [smem:[#allocation0]]
  $region61: #{model_forward.1} parent=0
    _
  %s10 = ssub.s32 1, %s8
  %s11 = scalar_select 0, %s10, %s8
  loop: start=0, step=1, limit=4
  $region2: #{model_forward.1} parent=0 // loop_pre_header
    _
  $region3: #{model_forward.1} parent=0 // loop_header
    %s13 = sphi 0, %s17
    %p14 = scmp.ge.s32.totalorder %s13, 4
    %s23 = sphi 0, %s25
    %s26 = sphi 0, %s23
    %s27 = sphi 0, %s26
    %s43 = sphi 0, %s27
    %s49 = sphi 0, %s51
    %s52 = sphi 0, %s49
    %s53 = sphi 0, %s52
    %s69 = sphi 0, %s53
    %s75 = sphi 0, %s77
    %s78 = sphi 0, %s75
    %s79 = sphi 0, %s78
    %s95 = sphi 0, %s79
    %s99 = sphi 0, %s99
    %s101 = sphi 0, %s99
    %s102 = sphi 0, %s101
    %s116 = sphi 0, %s102
    %s120 = sphi 0, %s120
    %s122 = sphi 0, %s120
    %s123 = sphi 0, %s122
    %s137 = sphi 0, %s123
    %s141 = sphi 0, %s141
    %s143 = sphi 0, %s141
    %s144 = sphi 0, %s143
    %s158 = sphi 0, %s144
    %s162 = sphi 0, %s162
    %s164 = sphi 0, %s162
    %s165 = sphi 0, %s164
    %s179 = sphi 0, %s165
    %s185 = sphi 0, %s187
    %s188 = sphi 0, %s185
    %s189 = sphi 0, %s188
    %s205 = sphi 0, %s189
  $region4: #{model_forward.1} parent=0 // loop_header_branch
    %16 = sbr.rel (%p14) target = $region8
  $region5: #{model_forward.1} parent=0 // loop_body
    %s18 = ssub.s32 %s13, 1
    %s19 = ssub.s32 %s13, 2
    %s20 = sadd.s32 %s13, 1
    %s21 = ssub.s32 %s13, %s20
    %p22 = scmp.eq.s32.totalorder %s21, 0
    %s24 = sadd.s32 %s23, 1
    %s25 = scalar_select %p22, %s23, %s24
    %p28 = pneg %p22
    %p29 = scmp.eq.s32.totalorder %s13, 1
    %p30 = por %p28, %p29
    %p31 = scmp.ne.s32.totalorder %s23, %s26
    %p32 = scmp.eq.s32.totalorder %s13, 0
    %p33 = por %p31, %p32
    %p34 = scmp.ne.s32.totalorder %s23, %s26
    %p35 = scmp.eq.s32.totalorder %s18, 1
    %p36 = por %p34, %p35
    %p37 = scmp.ne.s32.totalorder %s26, %s27
    %p38 = scmp.eq.s32.totalorder %s18, 0
    %p39 = por %p37, %p38
    %p40 = scmp.ne.s32.totalorder %s26, %s27
    %p41 = scmp.eq.s32.totalorder %s19, 1
    %p42 = por %p40, %p41
    %p44 = scmp.ne.s32.totalorder %s27, %s43
    %p45 = scmp.eq.s32.totalorder %s19, 0
    %p46 = por %p44, %p45
    %s47 = ssub.s32 %s13, %s20
    %p48 = scmp.eq.s32.totalorder %s47, 0
    %s50 = sadd.s32 %s49, 1
    %s51 = scalar_select %p48, %s49, %s50
    %p54 = pneg %p48
    %p55 = scmp.eq.s32.totalorder %s13, 1
    %p56 = por %p54, %p55
    %p57 = scmp.ne.s32.totalorder %s49, %s52
    %p58 = scmp.eq.s32.totalorder %s13, 0
    %p59 = por %p57, %p58
    %p60 = scmp.ne.s32.totalorder %s49, %s52
    %p61 = scmp.eq.s32.totalorder %s18, 1
    %p62 = por %p60, %p61
    %p63 = scmp.ne.s32.totalorder %s52, %s53
    %p64 = scmp.eq.s32.totalorder %s18, 0
    %p65 = por %p63, %p64
    %p66 = scmp.ne.s32.totalorder %s52, %s53
    %p67 = scmp.eq.s32.totalorder %s19, 1
    %p68 = por %p66, %p67
    %p70 = scmp.ne.s32.totalorder %s53, %s69
    %p71 = scmp.eq.s32.totalorder %s19, 0
    %p72 = por %p70, %p71
    %s73 = ssub.s32 %s13, %s20
    %p74 = scmp.eq.s32.totalorder %s73, 0
    %s76 = sadd.s32 %s75, 1
    %s77 = scalar_select %p74, %s75, %s76
    %p80 = pneg %p74
    %p81 = scmp.eq.s32.totalorder %s13, 1
    %p82 = por %p80, %p81
    %p83 = scmp.ne.s32.totalorder %s75, %s78
    %p84 = scmp.eq.s32.totalorder %s13, 0
    %p85 = por %p83, %p84
    %p86 = scmp.ne.s32.totalorder %s75, %s78
    %p87 = scmp.eq.s32.totalorder %s18, 1
    %p88 = por %p86, %p87
    %p89 = scmp.ne.s32.totalorder %s78, %s79
    %p90 = scmp.eq.s32.totalorder %s18, 0
    %p91 = por %p89, %p90
    %p92 = scmp.ne.s32.totalorder %s78, %s79
    %p93 = scmp.eq.s32.totalorder %s19, 1
    %p94 = por %p92, %p93
    %p96 = scmp.ne.s32.totalorder %s79, %s95
    %p97 = scmp.eq.s32.totalorder %s19, 0
    %p98 = por %p96, %p97
    %s100 = sadd.s32 %s99, 1
    %p103 = scmp.eq.s32.totalorder %s13, 1
    %p104 = scmp.ne.s32.totalorder %s99, %s101
    %p105 = scmp.eq.s32.totalorder %s13, 0
    %p106 = por %p104, %p105
    %p107 = scmp.ne.s32.totalorder %s99, %s101
    %p108 = scmp.eq.s32.totalorder %s18, 1
    %p109 = por %p107, %p108
    %p110 = scmp.ne.s32.totalorder %s101, %s102
    %p111 = scmp.eq.s32.totalorder %s18, 0
    %p112 = por %p110, %p111
    %p113 = scmp.ne.s32.totalorder %s101, %s102
    %p114 = scmp.eq.s32.totalorder %s19, 1
    %p115 = por %p113, %p114
    %p117 = scmp.ne.s32.totalorder %s102, %s116
    %p118 = scmp.eq.s32.totalorder %s19, 0
    %p119 = por %p117, %p118
    %s121 = sadd.s32 %s120, 1
    %p124 = scmp.eq.s32.totalorder %s13, 1
    %p125 = scmp.ne.s32.totalorder %s120, %s122
    %p126 = scmp.eq.s32.totalorder %s13, 0
    %p127 = por %p125, %p126
    %p128 = scmp.ne.s32.totalorder %s120, %s122
    %p129 = scmp.eq.s32.totalorder %s18, 1
    %p130 = por %p128, %p129
    %p131 = scmp.ne.s32.totalorder %s122, %s123
    %p132 = scmp.eq.s32.totalorder %s18, 0
    %p133 = por %p131, %p132
    %p134 = scmp.ne.s32.totalorder %s122, %s123
    %p135 = scmp.eq.s32.totalorder %s19, 1
    %p136 = por %p134, %p135
    %p138 = scmp.ne.s32.totalorder %s123, %s137
    %p139 = scmp.eq.s32.totalorder %s19, 0
    %p140 = por %p138, %p139
    %s142 = sadd.s32 %s141, 1
    %p145 = scmp.eq.s32.totalorder %s13, 1
    %p146 = scmp.ne.s32.totalorder %s141, %s143
    %p147 = scmp.eq.s32.totalorder %s13, 0
    %p148 = por %p146, %p147
    %p149 = scmp.ne.s32.totalorder %s141, %s143
    %p150 = scmp.eq.s32.totalorder %s18, 1
    %p151 = por %p149, %p150
    %p152 = scmp.ne.s32.totalorder %s143, %s144
    %p153 = scmp.eq.s32.totalorder %s18, 0
    %p154 = por %p152, %p153
    %p155 = scmp.ne.s32.totalorder %s143, %s144
    %p156 = scmp.eq.s32.totalorder %s19, 1
    %p157 = por %p155, %p156
    %p159 = scmp.ne.s32.totalorder %s144, %s158
    %p160 = scmp.eq.s32.totalorder %s19, 0
    %p161 = por %p159, %p160
    %s163 = sadd.s32 %s162, 1
    %p166 = scmp.eq.s32.totalorder %s13, 1
    %p167 = scmp.ne.s32.totalorder %s162, %s164
    %p168 = scmp.eq.s32.totalorder %s13, 0
    %p169 = por %p167, %p168
    %p170 = scmp.ne.s32.totalorder %s162, %s164
    %p171 = scmp.eq.s32.totalorder %s18, 1
    %p172 = por %p170, %p171
    %p173 = scmp.ne.s32.totalorder %s164, %s165
    %p174 = scmp.eq.s32.totalorder %s18, 0
    %p175 = por %p173, %p174
    %p176 = scmp.ne.s32.totalorder %s164, %s165
    %p177 = scmp.eq.s32.totalorder %s19, 1
    %p178 = por %p176, %p177
    %p180 = scmp.ne.s32.totalorder %s165, %s179
    %p181 = scmp.eq.s32.totalorder %s19, 0
    %p182 = por %p180, %p181
    %s183 = ssub.s32 %s13, %s20
    %p184 = scmp.eq.s32.totalorder %s183, 0
    %s186 = sadd.s32 %s185, 1
    %s187 = scalar_select %p184, %s185, %s186
    %p190 = pneg %p184
    %p191 = scmp.eq.s32.totalorder %s13, 1
    %p192 = por %p190, %p191
    %p193 = scmp.ne.s32.totalorder %s185, %s188
    %p194 = scmp.eq.s32.totalorder %s13, 0
    %p195 = por %p193, %p194
    %p196 = scmp.ne.s32.totalorder %s185, %s188
    %p197 = scmp.eq.s32.totalorder %s18, 1
    %p198 = por %p196, %p197
    %p199 = scmp.ne.s32.totalorder %s188, %s189
    %p200 = scmp.eq.s32.totalorder %s18, 0
    %p201 = por %p199, %p200
    %p202 = scmp.ne.s32.totalorder %s188, %s189
    %p203 = scmp.eq.s32.totalorder %s19, 1
    %p204 = por %p202, %p203
    %p206 = scmp.ne.s32.totalorder %s189, %s205
    %p207 = scmp.eq.s32.totalorder %s19, 0
    %p208 = por %p206, %p207
    %p209 = scmp.le.s32.totalorder 1, %s13
    %p210 = scmp.lt.s32.totalorder %s13, 3
    %p211 = pnand %p209, %p210
    %p212 = pneg %p211
    // Predicated region
    $region9: #{model_forward.1} parent=5 // pred_check
      _
    $region10: #{model_forward.1} parent=5 // pred_check_branch
      %214 = sbr.rel (%p211) target = $region12
    $region11: #{model_forward.1} parent=5 // pred_region
      %s215 = ssub.s32 %s13, 1
      // Predicated region
      $region13: #{model_forward.1} parent=11 // pred_check
        %p216 = pneg %p112
      $region14: #{model_forward.1} parent=11 // pred_check_branch
        %218 = sbr.rel (%p216) target = $region16
      $region15: #{model_forward.1} parent=11 // pred_region
        _
      $region16: #{model_forward.1} parent=11 // pred_fallthru
        _
      // Predicated region
      $region17: #{model_forward.1} parent=11 // pred_check
        %p219 = pneg %p133
      $region18: #{model_forward.1} parent=11 // pred_check_branch
        %221 = sbr.rel (%p219) target = $region20
      $region19: #{model_forward.1} parent=11 // pred_region
        _
      $region20: #{model_forward.1} parent=11 // pred_fallthru
        _
      // Predicated region
      $region21: #{model_forward.1} parent=11 // pred_check
        %p222 = pneg %p154
      $region22: #{model_forward.1} parent=11 // pred_check_branch
        %224 = sbr.rel (%p222) target = $region24
      $region23: #{model_forward.1} parent=11 // pred_region
        _
      $region24: #{model_forward.1} parent=11 // pred_fallthru
        _
      // Predicated region
      $region25: #{model_forward.1} parent=11 // pred_check
        %p225 = pneg %p175
      $region26: #{model_forward.1} parent=11 // pred_check_branch
        %227 = sbr.rel (%p225) target = $region28
      $region27: #{model_forward.1} parent=11 // pred_region
        _
      $region28: #{model_forward.1} parent=11 // pred_fallthru
        _
    $region12: #{model_forward.1} parent=5 // pred_fallthru
      _
    %p228 = scmp.lt.s32.totalorder %s13, 2
    // Predicated region
    $region29: #{model_forward.1} parent=5 // pred_check
      %p229 = pneg %p228
    $region30: #{model_forward.1} parent=5 // pred_check_branch
      %231 = sbr.rel (%p229) target = $region32
    $region31: #{model_forward.1} parent=5 // pred_region
      // Predicated region
      $region33: #{model_forward.1} parent=31 // pred_check
        %p232 = pneg %p33
      $region34: #{model_forward.1} parent=31 // pred_check_branch
        %234 = sbr.rel (%p232) target = $region36
      $region35: #{model_forward.1} parent=31 // pred_region
        %p235 = scmp.lt.s32.totalorder %s13, 1
        %s236 = scalar_select %p235, %s13, 1
        %s237 = smul.addr %s236, 2
        %s238 = smul.addr %s237, 8
        %s239 = scalar_lea.vmem %s0, %s238
      $region36: #{model_forward.1} parent=31 // pred_fallthru
        _
      // Predicated region
      $region37: #{model_forward.1} parent=31 // pred_check
        %p240 = pneg %p59
      $region38: #{model_forward.1} parent=31 // pred_check_branch
        %242 = sbr.rel (%p240) target = $region40
      $region39: #{model_forward.1} parent=31 // pred_region
        %p243 = scmp.lt.s32.totalorder %s13, 1
        %s244 = scalar_select %p243, %s13, 1
        %s245 = smul.addr %s244, 2
        %s246 = smul.addr %s245, 8
        %s247 = scalar_lea.vmem %s1, %s246
      $region40: #{model_forward.1} parent=31 // pred_fallthru
        _
      // Predicated region
      $region41: #{model_forward.1} parent=31 // pred_check
        %p248 = pneg %p85
      $region42: #{model_forward.1} parent=31 // pred_check_branch
        %250 = sbr.rel (%p248) target = $region44
      $region43: #{model_forward.1} parent=31 // pred_region
        %p251 = scmp.lt.s32.totalorder %s13, 1
        %s252 = scalar_select %p251, %s13, 1
        %s253 = smul.addr %s252, 2
        %s254 = smul.addr %s253, 8
        %s255 = scalar_lea.vmem %s2, %s254
      $region44: #{model_forward.1} parent=31 // pred_fallthru
        _
    $region32: #{model_forward.1} parent=5 // pred_fallthru
      _
    %p256 = scmp.le.s32.totalorder 1, %s13
    %p257 = scmp.lt.s32.totalorder %s13, 3
    %p258 = pnand %p256, %p257
    %p259 = pneg %p258
    // Predicated region
    $region45: #{model_forward.1} parent=5 // pred_check
      _
    $region46: #{model_forward.1} parent=5 // pred_check_branch
      %261 = sbr.rel (%p258) target = $region48
    $region47: #{model_forward.1} parent=5 // pred_region
      %s262 = ssub.s32 %s13, 1
      %p263 = scmp.lt.s32.totalorder %s18, 1
      %s264 = scalar_select %p263, %s18, 1
      %s265 = smul.addr %s264, 2
      %s266 = smul.addr %s265, 8
      %s267 = scalar_lea.vmem %s0, %s266
      %p268 = pneg %p39
      %p269 = pneg %p36
      %p270 = scmp.lt.s32.totalorder %s18, 1
      %s271 = scalar_select %p270, %s18, 1
      %s272 = smul.addr %s271, 2
      %s273 = smul.addr %s272, 8
      %s274 = scalar_lea.vmem %s1, %s273
      %p275 = pneg %p65
      %p276 = pneg %p62
      %p277 = scmp.lt.s32.totalorder %s18, 1
      %s278 = scalar_select %p277, %s18, 1
      %s279 = smul.addr %s278, 2
      %s280 = smul.addr %s279, 8
      %s281 = scalar_lea.vmem %s2, %s280
      %p282 = pneg %p91
      %p283 = pneg %p88
      %p284 = pneg %p112
      %p285 = pneg %p109
      %p286 = pneg %p133
      %p287 = pneg %p130
      %p288 = pneg %p154
      %p289 = pneg %p151
      %p290 = pneg %p175
      %p291 = pneg %p172
      %p292 = pneg %p201
      %p293 = pneg %p198
      %p294 = scmp.lt.s32.totalorder %s18, 1
      %s295 = scalar_select %p294, %s18, 1
      %s296 = smul.addr %s295, 8
      %s297 = scalar_lea.vmem %s7, %s296
      %p298 = scmp.lt.s32.totalorder %s18, 1
      %s299 = scalar_select %p298, %s18, 1
      %s300 = smul.addr %s299, 2
      %s301 = smul.addr %s300, 8
      %s302 = scalar_lea.vmem %s0, %s301
      %p303 = scmp.lt.s32.totalorder %s18, 1
      %s304 = scalar_select %p303, %s18, 1
      %s305 = smul.addr %s304, 2
      %s306 = smul.addr %s305, 8
      %s307 = scalar_lea.vmem %s1, %s306
      %p308 = scmp.lt.s32.totalorder %s18, 1
      %s309 = scalar_select %p308, %s18, 1
      %s310 = smul.addr %s309, 2
      %s311 = smul.addr %s310, 8
      %s312 = scalar_lea.vmem %s2, %s311
      %p313 = scmp.lt.s32.totalorder %s18, 1
      %s314 = scalar_select %p313, %s18, 1
      %s315 = smul.addr %s314, 8
      %s316 = scalar_lea.vmem %s7, %s315
      %v317 = vld [vmem:[%s302] sm:$0xff]
      %v318 = vld [vmem:[%s302 + $0x8] sm:$0xff]
      %v319 = vld [vmem:[%s307] sm:$0xff]
      %v320 = vld [vmem:[%s307 + $0x8] sm:$0xff]
      %v321 = vld [vmem:[%s312] sm:$0xff]
      %v322 = vld [vmem:[%s312 + $0x8] sm:$0xff]
      %v323 = vlaneseq
      %v324 = vshrl.u32 %v323, 7
      %v325 = vadd.s32 %v324, 8
      %v326 = vlaneseq
      %v327 = vshrl.u32 %v326, 7
      %v328 = vsub.s32 0, %v327
      %v329 = vrot.slane %v317, %v328
      %v330 = vlaneseq
      %v331 = vshrl.u32 %v330, 7
      %v332 = vsub.s32 7, %v331
      %v333 = vrot.slane %v318, %v332
      %v334 = vrot.slane %v317, 7
      %v335 = vrot.slane %v318, 7
      %vm336 = vcmp.lt.s32.totalorder %v324, 1
      %v337 = vsel %vm336, %v334, %v335
      %v338 = vsel %vm336, %v335, %v334
      %vm339 = vcmp.lt.s32.totalorder %v325, 1
      %v340 = vsel %vm336, %v329, %v338
      %v341 = vsel %vm339, %v329, %v337
      %v342 = vadd.f32 %v317, %v340
      %v343 = vadd.f32 %v318, %v341
      %v344 = vrot.slane %v317, 1
      %v345 = vrot.slane %v318, 1
      %vm346 = vcmp.lt.s32.totalorder %v324, 7
      %v347 = vsel %vm346, %v344, %v345
      %v348 = vsel %vm346, %v345, %v344
      %vm349 = vcmp.ge.s32.totalorder %v324, 15
      %vm350 = vcmp.ge.s32.totalorder %v325, 15
      %v351 = vsel %vm349, %v333, %v347
      %v352 = vsel %vm350, %v333, %v348
      %v353 = vadd.f32 %v342, %v351
      %v354 = vadd.f32 %v343, %v352
      %v355 = vrot.slane %v317, 6
      %v356 = vrot.slane %v318, 6
      %vm357 = vcmp.lt.s32.totalorder %v324, 2
      %v358 = vsel %vm357, %v355, %v356
      %v359 = vsel %vm357, %v356, %v355
      %vm360 = vcmp.lt.s32.totalorder %v325, 2
      %v361 = vsel %vm357, %v329, %v359
      %v362 = vsel %vm360, %v329, %v358
      %v363 = vadd.f32 %v353, %v361
      %v364 = vadd.f32 %v354, %v362
      %v365 = vrot.slane %v317, 2
      %v366 = vrot.slane %v318, 2
      %vm367 = vcmp.lt.s32.totalorder %v324, 6
      %v368 = vsel %vm367, %v365, %v366
      %v369 = vsel %vm367, %v366, %v365
      %vm370 = vcmp.ge.s32.totalorder %v324, 14
      %vm371 = vcmp.ge.s32.totalorder %v325, 14
      %v372 = vsel %vm370, %v333, %v368
      %v373 = vsel %vm371, %v333, %v369
      %v374 = vadd.f32 %v363, %v372
      %v375 = vadd.f32 %v364, %v373
      %v376 = vmul.f32 %v374, 0.2
      %v377 = vmul.f32 %v375, 0.2
      %v378 = vsub.f32 %v317, %v376
      %v379 = vsub.f32 %v318, %v377
      %vm380 = vcmask 31744
      %v381 = vsel %vm380, %v317, 0.0
      %v382 = vsel %vm380, %v318, 0.0
      %v383 = vadd.f32 %v381, %v382
      %v384 = vrot.slane %v383, 4
      %v385 = vadd.f32 %v383, %v384
      %v386 = vrot.slane %v385, 2
      %v387 = vadd.f32 %v385, %v386
      %v388 = vrot.slane %v387, 1
      %v389 = vadd.f32 %v387, %v388
      %v390 = vrcp.pop 16.0
      %v391 = vmul.f32 %v389, %v390
      %vm392 = vcmp.lt.s32.totalorder %v324, 8
      %vm393 = vcmp.lt.s32.totalorder %v325, 8
      %v394 = vsel %vm392, %v379, 0.0
      %v395 = vsel %vm393, %v378, 0.0
      %398 = vrot.lane.b32.xlu0 %v317, 4
      %v399 = vpop.permute.xlu0 %398
      %400 = vrot.lane.b32.xlu0 %v318, 4
      %v401 = vpop.permute.xlu0 %400
      %406 = vrot.lane.b32.xlu0 %v347, 8
      %v407 = vpop.permute.xlu0 %406
      %408 = vrot.lane.b32.xlu0 %v348, 8
      %v409 = vpop.permute.xlu0 %408
      %414 = vrot.lane.b32.xlu0 %v319, 12
      %v415 = vpop.permute.xlu0 %414
      %416 = vrot.lane.b32.xlu0 %v320, 12
      %v417 = vpop.permute.xlu0 %416
      %v420 = vsel %vm380, %v338, %v399
      %v421 = vsel %vm380, %v337, %v401
      %vm422 = vcmask 64512
      %v423 = vsel %vm422, %v420, %v407
      %v424 = vsel %vm422, %v421, %v409
      %vm425 = vcmask 97280
      %v426 = vsel %vm425, %v423, %v415
      %v427 = vsel %vm425, %v424, %v417
      %v428 = vld [vmem:[%s3] sm:$0xff]
      %v429 = vld [vmem:[%s3 + $0x8] sm:$0xff]
      %vm430 = vcmask 130048
      %v432 = vsel %vm430, %v426, 0
      %v435 = vsel %vm430, %v427, 0
      %437 = vmatprep.subr.mxu0 0.0
      %438 = vmatpush1.msra.mxu0 %v428
      %439 = vmatprep.subr.mxu0 0.0
      %440 = vmatpush1.msra.mxu0 %v429
      %441 = vmatprep.subr.mxu0 0.0
      %442 = vmatpush1.msra.mxu0 0.0
      %443 = vmatprep.subr.mxu0 0.0
      %444 = vmatpush1.msra.mxu0 0.0
      %445 = vmatprep.subr.mxu0 0.0
      %446 = vmatpush1.msra.mxu0 0.0
      %447 = vmatprep.subr.mxu0 0.0
      %448 = vmatpush1.msra.mxu0 0.0
      %449 = vmatprep.subr.mxu0 0.0
      %450 = vmatpush1.msra.mxu0 0.0
      %451 = vmatprep.subr.mxu0 0.0
      %452 = vmatpush1.msra.mxu0 0.0
      %453 = vmatprep.subr.mxu0 0.0
      %454 = vmatpush1.msra.mxu0 0.0
      %455 = vmatprep.subr.mxu0 0.0
      %456 = vmatpush1.msra.mxu0 0.0
      %457 = vmatprep.subr.mxu0 0.0
      %458 = vmatpush1.msra.mxu0 0.0
      %459 = vmatprep.subr.mxu0 0.0
      %460 = vmatpush1.msra.mxu0 0.0
      %461 = vmatprep.subr.mxu0 0.0
      %462 = vmatpush1.msra.mxu0 0.0
      %463 = vmatprep.subr.mxu0 0.0
      %464 = vmatpush1.msra.mxu0 0.0
      %465 = vmatprep.subr.mxu0 0.0
      %466 = vmatpush1.msra.mxu0 0.0
      %467 = vmatprep.subr.mxu0 0.0
      %468 = vmatpush1.msra.mxu0 0.0
      %469 = vmatprep.subr.mxu0 0.0
      %470 = vmatpush1.msra.mxu0 0.0
      %471 = vmatprep.subr.mxu0 0.0
      %472 = vmatpush1.msra.mxu0 0.0
      %473 = vmatprep.subr.mxu0 0.0
      %474 = vmatpush1.msra.mxu0 0.0
      %475 = vmatprep.subr.mxu0 0.0
      %476 = vmatpush1.msra.mxu0 0.0
      %477 = vmatprep.subr.mxu0 0.0
      %478 = vmatpush1.msra.mxu0 0.0
      %479 = vmatprep.subr.mxu0 0.0
      %480 = vmatpush1.msra.mxu0 0.0
      %481 = vmatprep.subr.mxu0 0.0
      %482 = vmatpush1.msra.mxu0 0.0
      %483 = vmatprep.subr.mxu0 0.0
      %484 = vmatpush1.msra.mxu0 0.0
      %485 = vmatprep.subr.mxu0 0.0
      %486 = vmatpush1.msra.mxu0 0.0
      %487 = vmatprep.subr.mxu0 0.0
      %488 = vmatpush1.msra.mxu0 0.0
      %489 = vmatprep.subr.mxu0 0.0
      %490 = vmatpush1.msra.mxu0 0.0
      %491 = vmatprep.subr.mxu0 0.0
      %492 = vmatpush1.msra.mxu0 0.0
      %493 = vmatprep.subr.mxu0 0.0
      %494 = vmatpush1.msra.mxu0 0.0
      %495 = vmatprep.subr.mxu0 0.0
      %496 = vmatpush1.msra.mxu0 0.0
      %497 = vmatprep.subr.mxu0 0.0
      %498 = vmatpush1.msra.mxu0 0.0
      %499 = vmatprep.subr.mxu0 0.0
      %500 = vmatpush1.msra.mxu0 0.0
      %501 = vmatprep.mubr.f32.mxu0 0.0
      %502 = vmatmul.mubr.f32.gmra.mrb[0].mxu0 %v432
      %v503 = vpop.f32.mrb[0].mxu0
      %v504 = vadd.f32 0.0, %v503
      %v505 = vpop.f32.mrb[0].mxu0
      %506 = vmatprep.mubr.f32.mxu0 0.0
      %507 = vmatmul.mubr.f32.gmra.mrb[0].mxu0 %v435
      %v508 = vpop.f32.mrb[0].mxu0
      %v509 = vadd.f32 0.0, %v508
      %v510 = vpop.f32.mrb[0].mxu0
      %511 = vdwg.mxu0
      %v512 = vrot.slane %v394, 7
      %v513 = vrot.slane %v395, 7
      %v514 = vsel %vm336, %v512, %v513
      %v515 = vsel %vm336, %v513, %v512
      %v516 = vrot.slane %v394, 1
      %v517 = vrot.slane %v395, 1
      %v518 = vsel %vm346, %v516, %v517
      %v519 = vsel %vm346, %v517, %v516
      %522 = vrot.lane.b32.xlu0 %v394, 4
      %v523 = vpop.permute.xlu0 %522
      %524 = vrot.lane.b32.xlu0 %v395, 4
      %v525 = vpop.permute.xlu0 %524
      %530 = vrot.lane.b32.xlu0 %v518, 8
      %v531 = vpop.permute.xlu0 %530
      %532 = vrot.lane.b32.xlu0 %v519, 8
      %v533 = vpop.permute.xlu0 %532
      %538 = vrot.lane.b32.xlu0 %v321, 12
      %v539 = vpop.permute.xlu0 %538
      %540 = vrot.lane.b32.xlu0 %v322, 12
      %v541 = vpop.permute.xlu0 %540
      %v544 = vsel %vm380, %v515, %v523
      %v545 = vsel %vm380, %v514, %v525
      %v546 = vsel %vm422, %v544, %v531
      %v547 = vsel %vm422, %v545, %v533
      %v548 = vsel %vm425, %v546, %v539
      %v549 = vsel %vm425, %v547, %v541
      %v550 = vld [vmem:[%s4] sm:$0xff]
      %v551 = vld [vmem:[%s4 + $0x8] sm:$0xff]
      %v553 = vsel %vm430, %v548, 0
      %v556 = vsel %vm430, %v549, 0
      %558 = vmatprep.subr.mxu0 0.0
      %559 = vmatpush1.msra.mxu0 %v550
      %560 = vmatprep.subr.mxu0 0.0
      %561 = vmatpush1.msra.mxu0 %v551
      %562 = vmatprep.subr.mxu0 0.0
      %563 = vmatpush1.msra.mxu0 0.0
      %564 = vmatprep.subr.mxu0 0.0
      %565 = vmatpush1.msra.mxu0 0.0
      %566 = vmatprep.subr.mxu0 0.0
      %567 = vmatpush1.msra.mxu0 0.0
      %568 = vmatprep.subr.mxu0 0.0
      %569 = vmatpush1.msra.mxu0 0.0
      %570 = vmatprep.subr.mxu0 0.0
      %571 = vmatpush1.msra.mxu0 0.0
      %572 = vmatprep.subr.mxu0 0.0
      %573 = vmatpush1.msra.mxu0 0.0
      %574 = vmatprep.subr.mxu0 0.0
      %575 = vmatpush1.msra.mxu0 0.0
      %576 = vmatprep.subr.mxu0 0.0
      %577 = vmatpush1.msra.mxu0 0.0
      %578 = vmatprep.subr.mxu0 0.0
      %579 = vmatpush1.msra.mxu0 0.0
      %580 = vmatprep.subr.mxu0 0.0
      %581 = vmatpush1.msra.mxu0 0.0
      %582 = vmatprep.subr.mxu0 0.0
      %583 = vmatpush1.msra.mxu0 0.0
      %584 = vmatprep.subr.mxu0 0.0
      %585 = vmatpush1.msra.mxu0 0.0
      %586 = vmatprep.subr.mxu0 0.0
      %587 = vmatpush1.msra.mxu0 0.0
      %588 = vmatprep.subr.mxu0 0.0
      %589 = vmatpush1.msra.mxu0 0.0
      %590 = vmatprep.subr.mxu0 0.0
      %591 = vmatpush1.msra.mxu0 0.0
      %592 = vmatprep.subr.mxu0 0.0
      %593 = vmatpush1.msra.mxu0 0.0
      %594 = vmatprep.subr.mxu0 0.0
      %595 = vmatpush1.msra.mxu0 0.0
      %596 = vmatprep.subr.mxu0 0.0
      %597 = vmatpush1.msra.mxu0 0.0
      %598 = vmatprep.subr.mxu0 0.0
      %599 = vmatpush1.msra.mxu0 0.0
      %600 = vmatprep.subr.mxu0 0.0
      %601 = vmatpush1.msra.mxu0 0.0
      %602 = vmatprep.subr.mxu0 0.0
      %603 = vmatpush1.msra.mxu0 0.0
      %604 = vmatprep.subr.mxu0 0.0
      %605 = vmatpush1.msra.mxu0 0.0
      %606 = vmatprep.subr.mxu0 0.0
      %607 = vmatpush1.msra.mxu0 0.0
      %608 = vmatprep.subr.mxu0 0.0
      %609 = vmatpush1.msra.mxu0 0.0
      %610 = vmatprep.subr.mxu0 0.0
      %611 = vmatpush1.msra.mxu0 0.0
      %612 = vmatprep.subr.mxu0 0.0
      %613 = vmatpush1.msra.mxu0 0.0
      %614 = vmatprep.subr.mxu0 0.0
      %615 = vmatpush1.msra.mxu0 0.0
      %616 = vmatprep.subr.mxu0 0.0
      %617 = vmatpush1.msra.mxu0 0.0
      %618 = vmatprep.subr.mxu0 0.0
      %619 = vmatpush1.msra.mxu0 0.0
      %620 = vmatprep.subr.mxu0 0.0
      %621 = vmatpush1.msra.mxu0 0.0
      %622 = vmatprep.mubr.f32.mxu0 0.0
      %623 = vmatmul.mubr.f32.gmra.mrb[0].mxu0 %v553
      %v624 = vpop.f32.mrb[0].mxu0
      %v625 = vpop.f32.mrb[0].mxu0
      %626 = vmatprep.mubr.f32.mxu0 0.0
      %627 = vmatmul.mubr.f32.gmra.mrb[0].mxu0 %v556
      %v628 = vpop.f32.mrb[0].mxu0
      %v629 = vadd.f32 0.0, %v628
      %v630 = vpop.f32.mrb[0].mxu0
      %631 = vdwg.mxu0
      %vm632 = vcmask 261120
      %v633 = vsel %vm632, %v504, 0.0
      %v634 = vsel %vm632, %v509, 0.0
      %v635 = vadd.f32 %v633, %v634
      %v636 = vrot.slane %v635, 4
      %v637 = vadd.f32 %v635, %v636
      %v638 = vrot.slane %v637, 2
      %v639 = vadd.f32 %v637, %v638
      %v640 = vrot.slane %v639, 1
      %v641 = vadd.f32 %v639, %v640
      %v642 = vmul.f32 %v641, %v390
      %v643 = vld [vmem:[%s6] sm:$0xff]
      %v644 = vld [vmem:[%s6 + $0x8] sm:$0xff]
      %v645 = vld [vmem:[%s6 + $0x10] sm:$0xff]
      %v646 = vld [vmem:[%s6 + $0x18] sm:$0xff]
      %v648 = vsel %vm632, %v642, 0
      %650 = vmatprep.subr.mxu0 0.0
      %651 = vmatpush1.msra.mxu0 %v643
      %652 = vmatprep.subr.mxu0 0.0
      %653 = vmatpush1.msra.mxu0 %v644
      %654 = vmatprep.subr.mxu0 0.0
      %655 = vmatpush1.msra.mxu0 %v645
      %656 = vmatprep.subr.mxu0 0.0
      %657 = vmatpush1.msra.mxu0 %v646
      %658 = vmatprep.subr.mxu0 0.0
      %659 = vmatpush1.msra.mxu0 0.0
      %660 = vmatprep.subr.mxu0 0.0
      %661 = vmatpush1.msra.mxu0 0.0
      %662 = vmatprep.subr.mxu0 0.0
      %663 = vmatpush1.msra.mxu0 0.0
      %664 = vmatprep.subr.mxu0 0.0
      %665 = vmatpush1.msra.mxu0 0.0
      %666 = vmatprep.subr.mxu0 0.0
      %667 = vmatpush1.msra.mxu0 0.0
      %668 = vmatprep.subr.mxu0 0.0
      %669 = vmatpush1.msra.mxu0 0.0
      %670 = vmatprep.subr.mxu0 0.0
      %671 = vmatpush1.msra.mxu0 0.0
      %672 = vmatprep.subr.mxu0 0.0
      %673 = vmatpush1.msra.mxu0 0.0
      %674 = vmatprep.subr.mxu0 0.0
      %675 = vmatpush1.msra.mxu0 0.0
      %676 = vmatprep.subr.mxu0 0.0
      %677 = vmatpush1.msra.mxu0 0.0
      %678 = vmatprep.subr.mxu0 0.0
      %679 = vmatpush1.msra.mxu0 0.0
      %680 = vmatprep.subr.mxu0 0.0
      %681 = vmatpush1.msra.mxu0 0.0
      %682 = vmatprep.subr.mxu0 0.0
      %683 = vmatpush1.msra.mxu0 0.0
      %684 = vmatprep.subr.mxu0 0.0
      %685 = vmatpush1.msra.mxu0 0.0
      %686 = vmatprep.subr.mxu0 0.0
      %687 = vmatpush1.msra.mxu0 0.0
      %688 = vmatprep.subr.mxu0 0.0
      %689 = vmatpush1.msra.mxu0 0.0
      %690 = vmatprep.subr.mxu0 0.0
      %691 = vmatpush1.msra.mxu0 0.0
      %692 = vmatprep.subr.mxu0 0.0
      %693 = vmatpush1.msra.mxu0 0.0
      %694 = vmatprep.subr.mxu0 0.0
      %695 = vmatpush1.msra.mxu0 0.0
      %696 = vmatprep.subr.mxu0 0.0
      %697 = vmatpush1.msra.mxu0 0.0
      %698 = vmatprep.subr.mxu0 0.0
      %699 = vmatpush1.msra.mxu0 0.0
      %700 = vmatprep.subr.mxu0 0.0
      %701 = vmatpush1.msra.mxu0 0.0
      %702 = vmatprep.subr.mxu0 0.0
      %703 = vmatpush1.msra.mxu0 0.0
      %704 = vmatprep.subr.mxu0 0.0
      %705 = vmatpush1.msra.mxu0 0.0
      %706 = vmatprep.subr.mxu0 0.0
      %707 = vmatpush1.msra.mxu0 0.0
      %708 = vmatprep.subr.mxu0 0.0
      %709 = vmatpush1.msra.mxu0 0.0
      %710 = vmatprep.subr.mxu0 0.0
      %711 = vmatpush1.msra.mxu0 0.0
      %712 = vmatprep.subr.mxu0 0.0
      %713 = vmatpush1.msra.mxu0 0.0
      %714 = vmatprep.mubr.f32.mxu0 0.0
      %715 = vmatmul.mubr.f32.gmra.mrb[0].mxu0 %v648
      %v716 = vpop.f32.mrb[0].mxu0
      %v717 = vadd.f32 0.0, %v716
      %v718 = vpop.f32.mrb[0].mxu0
      %719 = vdwg.mxu0
      %v720 = vld [vmem:[%s5] sm:$0xff]
      %v721 = vld [vmem:[%s5 + $0x8] sm:$0xff]
      %v722 = vld [vmem:[%s5 + $0x10] sm:$0xff]
      %v723 = vld [vmem:[%s5 + $0x18] sm:$0xff]
      %v725 = vsel %vm632, %v629, 0
      %727 = vmatprep.subr.mxu0 0.0
      %728 = vmatpush1.msra.mxu0 %v720
      %729 = vmatprep.subr.mxu0 0.0
      %730 = vmatpush1.msra.mxu0 %v721
      %731 = vmatprep.subr.mxu0 0.0
      %732 = vmatpush1.msra.mxu0 %v722
      %733 = vmatprep.subr.mxu0 0.0
      %734 = vmatpush1.msra.mxu0 %v723
      %735 = vmatprep.subr.mxu0 0.0
      %736 = vmatpush1.msra.mxu0 0.0
      %737 = vmatprep.subr.mxu0 0.0
      %738 = vmatpush1.msra.mxu0 0.0
      %739 = vmatprep.subr.mxu0 0.0
      %740 = vmatpush1.msra.mxu0 0.0
      %741 = vmatprep.subr.mxu0 0.0
      %742 = vmatpush1.msra.mxu0 0.0
      %743 = vmatprep.subr.mxu0 0.0
      %744 = vmatpush1.msra.mxu0 0.0
      %745 = vmatprep.subr.mxu0 0.0
      %746 = vmatpush1.msra.mxu0 0.0
      %747 = vmatprep.subr.mxu0 0.0
      %748 = vmatpush1.msra.mxu0 0.0
      %749 = vmatprep.subr.mxu0 0.0
      %750 = vmatpush1.msra.mxu0 0.0
      %751 = vmatprep.subr.mxu0 0.0
      %752 = vmatpush1.msra.mxu0 0.0
      %753 = vmatprep.subr.mxu0 0.0
      %754 = vmatpush1.msra.mxu0 0.0
      %755 = vmatprep.subr.mxu0 0.0
      %756 = vmatpush1.msra.mxu0 0.0
      %757 = vmatprep.subr.mxu0 0.0
      %758 = vmatpush1.msra.mxu0 0.0
      %759 = vmatprep.subr.mxu0 0.0
      %760 = vmatpush1.msra.mxu0 0.0
      %761 = vmatprep.subr.mxu0 0.0
      %762 = vmatpush1.msra.mxu0 0.0
      %763 = vmatprep.subr.mxu0 0.0
      %764 = vmatpush1.msra.mxu0 0.0
      %765 = vmatprep.subr.mxu0 0.0
      %766 = vmatpush1.msra.mxu0 0.0
      %767 = vmatprep.subr.mxu0 0.0
      %768 = vmatpush1.msra.mxu0 0.0
      %769 = vmatprep.subr.mxu0 0.0
      %770 = vmatpush1.msra.mxu0 0.0
      %771 = vmatprep.subr.mxu0 0.0
      %772 = vmatpush1.msra.mxu0 0.0
      %773 = vmatprep.subr.mxu0 0.0
      %774 = vmatpush1.msra.mxu0 0.0
      %775 = vmatprep.subr.mxu0 0.0
      %776 = vmatpush1.msra.mxu0 0.0
      %777 = vmatprep.subr.mxu0 0.0
      %778 = vmatpush1.msra.mxu0 0.0
      %779 = vmatprep.subr.mxu0 0.0
      %780 = vmatpush1.msra.mxu0 0.0
      %781 = vmatprep.subr.mxu0 0.0
      %782 = vmatpush1.msra.mxu0 0.0
      %783 = vmatprep.subr.mxu0 0.0
      %784 = vmatpush1.msra.mxu0 0.0
      %785 = vmatprep.subr.mxu0 0.0
      %786 = vmatpush1.msra.mxu0 0.0
      %787 = vmatprep.subr.mxu0 0.0
      %788 = vmatpush1.msra.mxu0 0.0
      %789 = vmatprep.subr.mxu0 0.0
      %790 = vmatpush1.msra.mxu0 0.0
      %791 = vmatprep.mubr.f32.mxu0 0.0
      %792 = vmatmul.mubr.f32.gmra.mrb[0].mxu0 %v725
      %v793 = vpop.f32.mrb[0].mxu0
      %v794 = vadd.f32 0.0, %v793
      %v795 = vpop.f32.mrb[0].mxu0
      %796 = vdwg.mxu0
      %v797 = vadd.f32 %v391, %v794
      %v798 = vlaneseq
      %v799 = vshrl.u32 %v798, 7
      %v800 = vsub.s32 0, %v799
      %v801 = vrot.slane %v717, %v800
      %v802 = vadd.f32 %v797, %v801
      %803 = vst.msk [vmem:[%s316] sm:$0xff] %vm380, %v802
      %p804 = scmp.lt.s32.totalorder %s18, 1
      %s805 = scalar_select %p804, %s18, 1
      %s806 = smul.addr %s805, 8
      %s807 = scalar_lea.vmem %s7, %s806
      // Predicated region
      $region49: #{model_forward.1} parent=47 // pred_check
        %p808 = pneg %p198
      $region50: #{model_forward.1} parent=47 // pred_check_branch
        %810 = sbr.rel (%p808) target = $region52
      $region51: #{model_forward.1} parent=47 // pred_region
        _
      $region52: #{model_forward.1} parent=47 // pred_fallthru
        _
    $region48: #{model_forward.1} parent=5 // pred_fallthru
      _
    %p811 = scmp.le.s32.totalorder 2, %s13
    // Predicated region
    $region53: #{model_forward.1} parent=5 // pred_check
      %p812 = pneg %p811
    $region54: #{model_forward.1} parent=5 // pred_check_branch
      %814 = sbr.rel (%p812) target = $region56
    $region55: #{model_forward.1} parent=5 // pred_region
      %s815 = ssub.s32 %s13, 2
      // Predicated region
      $region57: #{model_forward.1} parent=55 // pred_check
        %p816 = pneg %p204
      $region58: #{model_forward.1} parent=55 // pred_check_branch
        %818 = sbr.rel (%p816) target = $region60
      $region59: #{model_forward.1} parent=55 // pred_region
        %p819 = scmp.lt.s32.totalorder %s19, 1
        %s820 = scalar_select %p819, %s19, 1
        %s821 = smul.addr %s820, 8
        %s822 = scalar_lea.vmem %s7, %s821
      $region60: #{model_forward.1} parent=55 // pred_fallthru
        _
    $region56: #{model_forward.1} parent=5 // pred_fallthru
      _
  $region6: #{model_forward.1} parent=0 // loop_footer
    %s17 = sadd.s32 1, %s13
  $region7: #{model_forward.1} parent=0 // loop_footer_branch
    %12 = sbr.rel target = $region3
  $region8: #{model_forward.1} parent=0 // loop_exit
    _

</llo_original>
